<compile_context>
chip_gen: v7x
topology: tpu7x:2x2x1
jax: 0.10.0
libtpu: 0.0.40
codegen_flags: <defaults>
</compile_context>

<pallas_src>
import functools
import math

import numpy as np
import jax
import jax.numpy as jnp
from jax import lax
from jax.experimental import pallas as pl
from jax.experimental.pallas import tpu as pltpu


def _make_kernel(half_dim: int, neg_emb_scale: float):
    """Build the kernel with the sinusoid parameters baked in as Python scalars."""
    quarter = 2 * half_dim
    half_pi = float(np.pi / 2.0)

    def kernel(t_ref, w1_ref, w2_ref, bias_ref, out_ref):
        # Sinusoid table, computed in-register (no DMA): column j uses
        # frequency exp(-(j mod half_dim) * scale) and phase 0 for the sin
        # half, pi/2 for the cos half (cos(x) = sin(x + pi/2)).
        col = lax.broadcasted_iota(jnp.int32, (1, quarter), 1)       # 0..quarter-1
        is_sin = col < half_dim
        j = jnp.where(is_sin, col, col - half_dim).astype(jnp.float32)
        freq = jnp.exp(j * neg_emb_scale)                            # (1, quarter)
        phase = jnp.where(is_sin, 0.0, half_pi)                      # (1, quarter)

        t = t_ref[...]                                               # (B, 1)
        emb = jnp.sin(t * freq + phase)                              # (B, quarter)

        # lin1 + SiLU
        h = jnp.dot(emb, w1_ref[...], preferred_element_type=jnp.float32)
        h = h + bias_ref[0:1, :]
        h = h * jax.nn.sigmoid(h)

        # lin2
        out = jnp.dot(h, w2_ref[...], preferred_element_type=jnp.float32)
        out = out + bias_ref[1:2, :]
        out_ref[...] = out.astype(out_ref.dtype)

    return kernel


@functools.partial(jax.jit, static_argnames=("n_channels",))
def time_embedding(t, w1, b1, w2, b2, *, n_channels):
    """t: [B] float -> [B, n_channels] float32."""
    if n_channels % 8 != 0 or n_channels < 16:
        # half_dim == 1 would divide by zero in the sinusoid scale (as in torch).
        raise ValueError("n_channels must be a multiple of 8 and >= 16")
    B = t.shape[0]
    half_dim = n_channels // 8
    neg_emb_scale = -math.log(10000.0) / (half_dim - 1)

    t2 = t.astype(jnp.float32).reshape(B, 1)
    biases = jnp.stack(
        [b1.astype(jnp.float32), b2.astype(jnp.float32)], axis=0)   # (2, n_channels)

    vmem = lambda: pl.BlockSpec(memory_space=pltpu.VMEM)
    return pl.pallas_call(
        _make_kernel(half_dim, neg_emb_scale),
        out_shape=jax.ShapeDtypeStruct((B, n_channels), jnp.float32),
        in_specs=[vmem(), vmem(), vmem(), vmem()],
        out_specs=vmem(),
    )(t2, w1.astype(jnp.float32), w2.astype(jnp.float32), biases)


def time_embedding_ref(t, w1, b1, w2, b2, n_channels):
    """Pure-JAX reference mirroring the PyTorch forward."""
    half_dim = n_channels // 8
    emb_scale = math.log(10000.0) / (half_dim - 1)
    freq = jnp.exp(jnp.arange(half_dim, dtype=jnp.float32) * -emb_scale)
    emb = t[:, None] * freq[None, :]
    emb = jnp.concatenate([jnp.sin(emb), jnp.cos(emb)], axis=1)
    h = emb @ w1 + b1
    h = h * jax.nn.sigmoid(h)
    return h @ w2 + b2


if __name__ == "__main__":
    n_channels = 32          # lin1: 8 -> 32, lin2: 32 -> 32
    batch = 8

    key = jax.random.PRNGKey(0)
    k_t, k_w1, k_b1, k_w2, k_b2 = jax.random.split(key, 5)

    # Deterministic synthetic parameters (stored as (in, out) so kernel does x @ W + b).
    in1 = n_channels // 4
    w1 = jax.random.normal(k_w1, (in1, n_channels), jnp.float32) * (1.0 / math.sqrt(in1))
    b1 = jax.random.normal(k_b1, (n_channels,), jnp.float32) * 0.01
    w2 = jax.random.normal(k_w2, (n_channels, n_channels), jnp.float32) * (1.0 / math.sqrt(n_channels))
    b2 = jax.random.normal(k_b2, (n_channels,), jnp.float32) * 0.01

    t = jax.random.uniform(k_t, (batch,), jnp.float32, minval=0.0, maxval=1000.0)

    out = time_embedding(t, w1, b1, w2, b2, n_channels=n_channels)
    out = jax.block_until_ready(out)

    expected = time_embedding_ref(t, w1, b1, w2, b2, n_channels)
    assert out.shape == (batch, n_channels)
    # Slightly looser tolerance than strict f32: the phase trick evaluates
    # cos(x) as sin(x + pi/2), which can differ from cos(x) by ~1 ulp of the
    # (large, up to ~1000) argument.
    assert jnp.allclose(out, expected, atol=5e-4, rtol=5e-4), "mismatch vs reference"

    print("KERNEL_OK")
</pallas_src>

<mosaic_0001>
module attributes {stable_mosaic.version = 11 : i64} {
  func.func @kernel(%arg0: memref<8x1xf32, #tpu.memory_space<vmem>>, %arg1: memref<8x32xf32, #tpu.memory_space<vmem>>, %arg2: memref<32x32xf32, #tpu.memory_space<vmem>>, %arg3: memref<2x32xf32, #tpu.memory_space<vmem>>, %arg4: memref<8x32xf32, #tpu.memory_space<vmem>>) attributes {dimension_semantics = [], scalar_prefetch = 0 : i64, scratch_operands = 0 : i64, tpu.core_type = #tpu.core_type<tc>} {
    %0 = tpu.iota {dimensions = array<i32: 1>} : vector<1x8xi32>
    %c4_i32 = arith.constant 4 : i32
    %1 = vector.broadcast %c4_i32 : i32 to vector<1x8xi32>
    %2 = arith.cmpi slt, %0, %1 : vector<1x8xi32>
    %c4_i32_0 = arith.constant 4 : i32
    %3 = vector.broadcast %c4_i32_0 : i32 to vector<1x8xi32>
    %4 = arith.subi %0, %3 : vector<1x8xi32>
    %5 = arith.select %2, %0, %4 : vector<1x8xi1>, vector<1x8xi32>
    %6 = arith.sitofp %5 : vector<1x8xi32> to vector<1x8xf32>
    %cst = arith.constant -3.07011342 : f32
    %7 = vector.broadcast %cst : f32 to vector<1x8xf32>
    %8 = arith.mulf %6, %7 : vector<1x8xf32>
    %9 = math.exp %8 : vector<1x8xf32>
    %cst_1 = arith.constant 0.000000e+00 : f32
    %cst_2 = arith.constant 1.57079637 : f32
    %10 = vector.broadcast %cst_1 : f32 to vector<1x8xf32>
    %11 = vector.broadcast %cst_2 : f32 to vector<1x8xf32>
    %12 = arith.select %2, %10, %11 : vector<1x8xi1>, vector<1x8xf32>
    %c0 = arith.constant 0 : index
    %c0_3 = arith.constant 0 : index
    %13 = vector.load %arg0[%c0, %c0_3] : memref<8x1xf32, #tpu.memory_space<vmem>>, vector<8x1xf32>
    %14 = vector.broadcast %13 : vector<8x1xf32> to vector<8x8xf32>
    %15 = vector.broadcast %9 : vector<1x8xf32> to vector<8x8xf32>
    %16 = arith.mulf %14, %15 : vector<8x8xf32>
    %17 = vector.broadcast %12 : vector<1x8xf32> to vector<8x8xf32>
    %18 = arith.addf %16, %17 : vector<8x8xf32>
    %19 = math.sin %18 : vector<8x8xf32>
    %c0_4 = arith.constant 0 : index
    %c0_5 = arith.constant 0 : index
    %20 = vector.load %arg1[%c0_4, %c0_5] : memref<8x32xf32, #tpu.memory_space<vmem>>, vector<8x32xf32>
    %cst_6 = arith.constant dense<0.000000e+00> : vector<8x32xf32>
    %21 = tpu.matmul %19, %20, %cst_6 {dimension_numbers = #tpu.dot_dimension_numbers<[1], [0], [0], [1], [0, 0, 1, 1], [], []>} : vector<8x8xf32>, vector<8x32xf32>, vector<8x32xf32> -> vector<8x32xf32>
    %c0_7 = arith.constant 0 : index
    %c0_8 = arith.constant 0 : index
    %22 = vector.load %arg3[%c0_7, %c0_8] : memref<2x32xf32, #tpu.memory_space<vmem>>, vector<1x32xf32>
    %23 = vector.broadcast %22 : vector<1x32xf32> to vector<8x32xf32>
    %24 = arith.addf %21, %23 : vector<8x32xf32>
    %25 = arith.negf %24 : vector<8x32xf32>
    %26 = math.exp %25 : vector<8x32xf32>
    %cst_9 = arith.constant 1.000000e+00 : f32
    %27 = vector.broadcast %cst_9 : f32 to vector<8x32xf32>
    %28 = arith.addf %27, %26 : vector<8x32xf32>
    %29 = arith.divf %27, %28 : vector<8x32xf32>
    %30 = arith.mulf %24, %29 : vector<8x32xf32>
    %c0_10 = arith.constant 0 : index
    %c0_11 = arith.constant 0 : index
    %31 = vector.load %arg2[%c0_10, %c0_11] : memref<32x32xf32, #tpu.memory_space<vmem>>, vector<32x32xf32>
    %cst_12 = arith.constant dense<0.000000e+00> : vector<8x32xf32>
    %32 = tpu.matmul %30, %31, %cst_12 {dimension_numbers = #tpu.dot_dimension_numbers<[1], [0], [0], [1], [0, 0, 1, 1], [], []>} : vector<8x32xf32>, vector<32x32xf32>, vector<8x32xf32> -> vector<8x32xf32>
    %c1 = arith.constant 1 : index
    %c0_13 = arith.constant 0 : index
    %33 = vector.load %arg3[%c1, %c0_13] : memref<2x32xf32, #tpu.memory_space<vmem>>, vector<1x32xf32>
    %34 = vector.broadcast %33 : vector<1x32xf32> to vector<8x32xf32>
    %35 = arith.addf %32, %34 : vector<8x32xf32>
    %c0_14 = arith.constant 0 : index
    %c0_15 = arith.constant 0 : index
    %36 = vector.load %arg4[%c0_14, %c0_15] : memref<8x32xf32, #tpu.memory_space<vmem>>, vector<8x32xf32>
    tpu.vector_store %arg4[%c0_14, %c0_15], %35 {strides = array<i32>} : memref<8x32xf32, #tpu.memory_space<vmem>>, vector<8x32xf32>,
    return
  }
}

</mosaic_0001>

<llo_original>
// kernel: time_embedding.1
$region0: #{time_embedding.1}
  #allocation0 [shape = 'u32[]', space=smem, size = 0x4, offset = 0x4, fixed_abs, tag = 'smem constant byte address 0x4 - core index']
  #allocation1 [shape = 'u32[144,128]{1,0:T(1,128)}', space=vmem, size = 0x12000, scoped, tag = 'internal scratch']
  %s0 = inlined_call_operand.vmem [shape: f32[8,1], index: 0, kind: input, shape index: {}]
  %s1 = inlined_call_operand.hbm [shape: f32[8,32], index: 1, kind: input, shape index: {}]
  %s2 = inlined_call_operand.vmem [shape: f32[32,32], index: 2, kind: input, shape index: {}]
  %s3 = inlined_call_operand.vmem [shape: f32[2,32], index: 3, kind: input, shape index: {}]
  %s4 = inlined_call_operand.hbm [shape: f32[8,32], index: 4, kind: output, shape index: {}]
  %s5 = sld [smem:[#allocation0]]
  $region30: #{time_embedding.1} parent=0
    _
  %s7 = ssub.s32 1, %s5
  %s8 = scalar_select 0, %s7, %s5
  $region1: #{time_embedding.1} parent=0
    #allocation2 [shape = 'u8[4096]{0}', space=vmem, size = 0x1000, scoped, tag = 'input window, operand 1, single buffered']
    #allocation3 [shape = 's32[1]{0}', space=sflag, size = 0x4, scoped, tag = 'scoped memory for time_embedding.1']
    #allocation4 [shape = 's32[1]{0}', space=sflag, size = 0x4, scoped, tag = 'scoped memory for time_embedding.1']
    #allocation5 [shape = 'u8[4096]{0}', space=vmem, size = 0x1000, scoped, tag = 'output window, operand 0, single buffered']
    %9 = vsyncpa [#allocation3], 0
    %10 = vsyncpa [#allocation4], 0
    // Predicated region
    $region2: #{time_embedding.1} parent=1 // pred_check
      _
    $region3: #{time_embedding.1} parent=1 // pred_check_branch
      %12 = sbr.rel (0) target = $region5
    $region4: #{time_embedding.1} parent=1 // pred_region
      _
    $region5: #{time_embedding.1} parent=1 // pred_fallthru
      _
    // Predicated region
    $region6: #{time_embedding.1} parent=1 // pred_check
      _
    $region7: #{time_embedding.1} parent=1 // pred_check_branch
      %14 = sbr.rel (0) target = $region9
    $region8: #{time_embedding.1} parent=1 // pred_region
      %s16 = ssub.s32 128, 128
      %17 = vsyncadd [#allocation3], %s16
      %s19 = sshll.u32 [#allocation2], 4
      %s20 = int_to_ptr.vmem [resolvable:$true] %s19
      %22 = dma.hbm_to_vmem [thread:$0]  %s1, 128, %s20, [#allocation3]
    $region9: #{time_embedding.1} parent=1 // pred_fallthru
      _
    // Predicated region
    $region10: #{time_embedding.1} parent=1 // pred_check
      _
    $region11: #{time_embedding.1} parent=1 // pred_check_branch
      %24 = sbr.rel (0) target = $region13
    $region12: #{time_embedding.1} parent=1 // pred_region
      _
    $region13: #{time_embedding.1} parent=1 // pred_fallthru
      _
    // Predicated region
    $region14: #{time_embedding.1} parent=1 // pred_check
      _
    $region15: #{time_embedding.1} parent=1 // pred_check_branch
      %26 = sbr.rel (0) target = $region17
    $region16: #{time_embedding.1} parent=1 // pred_region
      _
    $region17: #{time_embedding.1} parent=1 // pred_fallthru
      _
    // Predicated region
    $region18: #{time_embedding.1} parent=1 // pred_check
      _
    $region19: #{time_embedding.1} parent=1 // pred_check_branch
      %28 = sbr.rel (0) target = $region21
    $region20: #{time_embedding.1} parent=1 // pred_region
      %29 = dma.done [#allocation3], 128
    $region21: #{time_embedding.1} parent=1 // pred_fallthru
      _
    %v30 = vlaneseq
    %v31 = vand.u32 %v30, 127
    %vm32 = vcmp.lt.s32.totalorder %v31, 4
    %v33 = vsub.s32 %v31, 4
    %v34 = vsel %vm32, %v31, %v33
    %v35 = vcvt.s32.f32 %v34
    %v36 = vmul.f32 %v35, -3.0701134
    %v37 = vmul.f32 %v36, 1.442695
    %v38 = vpow.pop %v37
    %v39 = vsel %vm32, 0.0, 1.5707964
    %v40 = vld [vmem:[%s0] sm:$0xff]
    %42 = vset.pattern.permute.xlu0 0
    %43 = vperm.xlu0 %42, %v40
    %v44 = vpop.permute.xlu0 %43
    %v46 = vmul.f32 %v44, %v38
    %v47 = vadd.f32 %v46, %v39
    %v48 = vand.u32 2147483647, %v47
    %vm49 = vcmp.le.f32.partialorder %v48, 0.7853982
    %vm50 = vcmp.lt.s32.totalorder %v47, 0
    %v51 = vand.u32 %v47, 2139095040
    %v52 = vshrl.u32 %v51, 23
    %v53 = vsub.s32 %v52, 127
    %v54 = vand.u32 2147483647, %v47
    %v55 = vand.u32 %v54, 8388607
    %v56 = vor.u32 %v55, 8388608
    %v57 = vsub.s32 0, %v56
    %v58 = vadd.s32 %v53, 1
    %vm59 = vcmp.gt.s32.totalorder %v58, 0
    %v60 = vsel %vm59, %v58, 0
    %v61 = vshrl.u32 %v60, 5
    %v62 = vand.u32 %v60, 31
    %v63 = vsub.s32 32, %v62
    %v64 = vshrl.u32 683565275, %v63
    %v65 = vshll.u32 683565275, %v62
    %v66 = vshrl.u32 2475754826, %v63
    %v67 = vor.u32 %v65, %v66
    %v68 = vshll.u32 2475754826, %v62
    %v69 = vshrl.u32 2131351028, %v63
    %v70 = vor.u32 %v68, %v69
    %v71 = vshll.u32 2131351028, %v62
    %v72 = vshrl.u32 2102212464, %v63
    %v73 = vor.u32 %v71, %v72
    %v74 = vshll.u32 2102212464, %v62
    %v75 = vshrl.u32 920167782, %v63
    %v76 = vor.u32 %v74, %v75
    %v77 = vshll.u32 920167782, %v62
    %v78 = vshrl.u32 1326507024, %v63
    %v79 = vor.u32 %v77, %v78
    %vm80 = vcmp.lt.s32.totalorder %v61, 1
    %vm81 = vcmp.lt.s32.totalorder %v61, 2
    %vm82 = vcmp.lt.s32.totalorder %v61, 3
    %vm83 = vcmp.lt.s32.totalorder %v61, 4
    %v84 = vsel %vm80, %v64, %v67
    %v85 = vsel %vm83, %v73, 2102212464
    %v86 = vsel %vm82, %v70, %v85
    %v87 = vsel %vm81, %v84, %v86
    %v88 = vsel %vm80, %v67, %v70
    %v89 = vsel %vm83, %v76, 920167782
    %v90 = vsel %vm82, %v73, %v89
    %v91 = vsel %vm81, %v88, %v90
    %v92 = vsel %vm80, %v70, %v73
    %v93 = vsel %vm83, %v79, 1326507024
    %v94 = vsel %vm82, %v76, %v93
    %v95 = vsel %vm81, %v92, %v94
    %v96 = vshll.u32 %v56, 8
    %v97 = vmul.u32.u64.compose %v96, %v95
    %v98 = vextract.low.u32 %v97
    %v99 = vextract.high.u32 %v97
    %v100 = vmul.u32.u64.compose %v96, %v91
    %v101 = vextract.low.u32 %v100
    %v102 = vextract.high.u32 %v100
    %v103 = vmul.u32 %v96, %v87
    %v104 = vadd.s32 %v99, %v101
    %vm105 = vc.u32 %v99, %v101
    %v106 = vadd.s32 %v102, 1
    %v107 = vsel %vm105, %v106, %v102
    %v108 = vadd.s32 %v103, %v107
    %v109 = vadd.s32 %v108, 536870912
    %v110 = vshrl.u32 %v109, 30
    %v111 = vshll.u32 %v110, 30
    %v112 = vsub.s32 %v108, %v111
    %vm113 = vcmp.lt.s32.totalorder %v112, 0
    %v114 = vsub.s32 0, %v112
    %v115 = vsel %vm113, %v114, %v112
    %v116 = vclz %v115
    %v117 = vsub.s32 %v116, 2
    %vm118 = vcmp.gt.s32.totalorder 0, %v117
    %v119 = vsel %vm118, 0, %v117
    %v120 = vsub.s32 32, %v119
    %v121 = vshll.u32 %v112, %v119
    %v122 = vshrl.u32 %v104, %v120
    %v123 = vor.u32 %v121, %v122
    %v124 = vsub.s32 4294967266, %v119
    %v125 = vadd.s32 %v124, 127
    %v126 = vshll.u32 %v125, 23
    %v127 = vor.u32 4788187, %v126
    %v128 = vand.u32 2147483647, %v127
    %v130 = vcvt.s32.f32 %v123
    %v131 = vmul.f32 %v130, %v128
    %v132 = vxor.u32 %v131, 2147483648
    %v133 = vsel %vm50, %v132, %v131
    %v134 = vsub.s32 4, %v110
    %v135 = vsel %vm50, %v134, %v110
    %v136 = vsel %vm49, %v47, %v133
    %v137 = vsel %vm49, 0, %v135
    %v138 = vcosq.f32.pop %v136
    %v139 = vsinq.f32.pop %v136
    %vm140 = vweird.f32 %v47
    %v141 = vadd.s32 %v137, 3
    %v142 = vand.u32 %v141, 3
    %vm143 = vcmp.lt.s32.totalorder %v142, 2
    %vm144 = vcmp.eq.s32.totalorder %v142, 0
    %v145 = vxor.u32 %v139, 2147483648
    %v146 = vsel %vm144, %v138, %v145
    %vm147 = vcmp.eq.s32.totalorder %v142, 2
    %v148 = vxor.u32 %v138, 2147483648
    %v149 = vsel %vm147, %v148, %v139
    %v150 = vsel %vm143, %v146, %v149
    %v151 = vsel %vm140, nan, %v150
    %v152 = vld [vmem:[#allocation2] sm:$0xff]
    %v153 = vld [vmem:[%s3] sm:$0x1]
    %v154 = vlaneseq
    %v155 = vshrl.u32 %v154, 7
    %v156 = vsub.s32 0, %v155
    %v157 = vrot.slane %v153, %v156
    %vm158 = vcmask 64512
    %v160 = vsel %vm158, %v151, 0
    %162 = vmatprep.subr.mxu0 0.0
    %163 = vmatpush1.msra.mxu0 %v152
    %164 = vmatprep.subr.mxu0 0.0
    %165 = vmatpush1.msra.mxu0 0.0
    %166 = vmatprep.subr.mxu0 0.0
    %167 = vmatpush1.msra.mxu0 0.0
    %168 = vmatprep.subr.mxu0 0.0
    %169 = vmatpush1.msra.mxu0 0.0
    %170 = vmatprep.subr.mxu0 0.0
    %171 = vmatpush1.msra.mxu0 0.0
    %172 = vmatprep.subr.mxu0 0.0
    %173 = vmatpush1.msra.mxu0 0.0
    %174 = vmatprep.subr.mxu0 0.0
    %175 = vmatpush1.msra.mxu0 0.0
    %176 = vmatprep.subr.mxu0 0.0
    %177 = vmatpush1.msra.mxu0 0.0
    %178 = vmatprep.subr.mxu0 0.0
    %179 = vmatpush1.msra.mxu0 0.0
    %180 = vmatprep.subr.mxu0 0.0
    %181 = vmatpush1.msra.mxu0 0.0
    %182 = vmatprep.subr.mxu0 0.0
    %183 = vmatpush1.msra.mxu0 0.0
    %184 = vmatprep.subr.mxu0 0.0
    %185 = vmatpush1.msra.mxu0 0.0
    %186 = vmatprep.subr.mxu0 0.0
    %187 = vmatpush1.msra.mxu0 0.0
    %188 = vmatprep.subr.mxu0 0.0
    %189 = vmatpush1.msra.mxu0 0.0
    %190 = vmatprep.subr.mxu0 0.0
    %191 = vmatpush1.msra.mxu0 0.0
    %192 = vmatprep.subr.mxu0 0.0
    %193 = vmatpush1.msra.mxu0 0.0
    %194 = vmatprep.subr.mxu0 0.0
    %195 = vmatpush1.msra.mxu0 0.0
    %196 = vmatprep.subr.mxu0 0.0
    %197 = vmatpush1.msra.mxu0 0.0
    %198 = vmatprep.subr.mxu0 0.0
    %199 = vmatpush1.msra.mxu0 0.0
    %200 = vmatprep.subr.mxu0 0.0
    %201 = vmatpush1.msra.mxu0 0.0
    %202 = vmatprep.subr.mxu0 0.0
    %203 = vmatpush1.msra.mxu0 0.0
    %204 = vmatprep.subr.mxu0 0.0
    %205 = vmatpush1.msra.mxu0 0.0
    %206 = vmatprep.subr.mxu0 0.0
    %207 = vmatpush1.msra.mxu0 0.0
    %208 = vmatprep.subr.mxu0 0.0
    %209 = vmatpush1.msra.mxu0 0.0
    %210 = vmatprep.subr.mxu0 0.0
    %211 = vmatpush1.msra.mxu0 0.0
    %212 = vmatprep.subr.mxu0 0.0
    %213 = vmatpush1.msra.mxu0 0.0
    %214 = vmatprep.subr.mxu0 0.0
    %215 = vmatpush1.msra.mxu0 0.0
    %216 = vmatprep.subr.mxu0 0.0
    %217 = vmatpush1.msra.mxu0 0.0
    %218 = vmatprep.subr.mxu0 0.0
    %219 = vmatpush1.msra.mxu0 0.0
    %220 = vmatprep.subr.mxu0 0.0
    %221 = vmatpush1.msra.mxu0 0.0
    %222 = vmatprep.subr.mxu0 0.0
    %223 = vmatpush1.msra.mxu0 0.0
    %224 = vmatprep.subr.mxu0 0.0
    %225 = vmatpush1.msra.mxu0 0.0
    %226 = vmatprep.mubr.f32.mxu0 0.0
    %227 = vmatmul.mubr.f32.gmra.mrb[0].mxu0 %v160
    %v228 = vpop.f32.mrb[0].mxu0
    %v229 = vadd.f32 %v157, %v228
    %v230 = vpop.f32.mrb[0].mxu0
    %231 = vdwg.mxu0
    %v232 = vxor.u32 %v229, 2147483648
    %v233 = vmul.f32 %v232, 1.442695
    %v234 = vpow.pop %v233
    %v235 = vadd.f32 %v234, 1.0
    %v236 = vrcp.pop %v235
    %v237 = vmul.f32 1.0, %v236
    %v238 = vmul.f32 %v229, %v237
    %v239 = vld [vmem:[%s2] sm:$0xff]
    %v240 = vld [vmem:[%s2 + $0x8] sm:$0xff]
    %v241 = vld [vmem:[%s2 + $0x10] sm:$0xff]
    %v242 = vld [vmem:[%s2 + $0x18] sm:$0xff]
    %v243 = vld [vmem:[%s3 + $0x1] sm:$0x1]
    %v244 = vlaneseq
    %v245 = vshrl.u32 %v244, 7
    %v246 = vsub.s32 0, %v245
    %v247 = vrot.slane %v243, %v246
    %vm248 = vcmask 261120
    %v250 = vsel %vm248, %v238, 0
    %252 = vmatprep.subr.mxu0 0.0
    %253 = vmatpush1.msra.mxu0 %v239
    %254 = vmatprep.subr.mxu0 0.0
    %255 = vmatpush1.msra.mxu0 %v240
    %256 = vmatprep.subr.mxu0 0.0
    %257 = vmatpush1.msra.mxu0 %v241
    %258 = vmatprep.subr.mxu0 0.0
    %259 = vmatpush1.msra.mxu0 %v242
    %260 = vmatprep.subr.mxu0 0.0
    %261 = vmatpush1.msra.mxu0 0.0
    %262 = vmatprep.subr.mxu0 0.0
    %263 = vmatpush1.msra.mxu0 0.0
    %264 = vmatprep.subr.mxu0 0.0
    %265 = vmatpush1.msra.mxu0 0.0
    %266 = vmatprep.subr.mxu0 0.0
    %267 = vmatpush1.msra.mxu0 0.0
    %268 = vmatprep.subr.mxu0 0.0
    %269 = vmatpush1.msra.mxu0 0.0
    %270 = vmatprep.subr.mxu0 0.0
    %271 = vmatpush1.msra.mxu0 0.0
    %272 = vmatprep.subr.mxu0 0.0
    %273 = vmatpush1.msra.mxu0 0.0
    %274 = vmatprep.subr.mxu0 0.0
    %275 = vmatpush1.msra.mxu0 0.0
    %276 = vmatprep.subr.mxu0 0.0
    %277 = vmatpush1.msra.mxu0 0.0
    %278 = vmatprep.subr.mxu0 0.0
    %279 = vmatpush1.msra.mxu0 0.0
    %280 = vmatprep.subr.mxu0 0.0
    %281 = vmatpush1.msra.mxu0 0.0
    %282 = vmatprep.subr.mxu0 0.0
    %283 = vmatpush1.msra.mxu0 0.0
    %284 = vmatprep.subr.mxu0 0.0
    %285 = vmatpush1.msra.mxu0 0.0
    %286 = vmatprep.subr.mxu0 0.0
    %287 = vmatpush1.msra.mxu0 0.0
    %288 = vmatprep.subr.mxu0 0.0
    %289 = vmatpush1.msra.mxu0 0.0
    %290 = vmatprep.subr.mxu0 0.0
    %291 = vmatpush1.msra.mxu0 0.0
    %292 = vmatprep.subr.mxu0 0.0
    %293 = vmatpush1.msra.mxu0 0.0
    %294 = vmatprep.subr.mxu0 0.0
    %295 = vmatpush1.msra.mxu0 0.0
    %296 = vmatprep.subr.mxu0 0.0
    %297 = vmatpush1.msra.mxu0 0.0
    %298 = vmatprep.subr.mxu0 0.0
    %299 = vmatpush1.msra.mxu0 0.0
    %300 = vmatprep.subr.mxu0 0.0
    %301 = vmatpush1.msra.mxu0 0.0
    %302 = vmatprep.subr.mxu0 0.0
    %303 = vmatpush1.msra.mxu0 0.0
    %304 = vmatprep.subr.mxu0 0.0
    %305 = vmatpush1.msra.mxu0 0.0
    %306 = vmatprep.subr.mxu0 0.0
    %307 = vmatpush1.msra.mxu0 0.0
    %308 = vmatprep.subr.mxu0 0.0
    %309 = vmatpush1.msra.mxu0 0.0
    %310 = vmatprep.subr.mxu0 0.0
    %311 = vmatpush1.msra.mxu0 0.0
    %312 = vmatprep.subr.mxu0 0.0
    %313 = vmatpush1.msra.mxu0 0.0
    %314 = vmatprep.subr.mxu0 0.0
    %315 = vmatpush1.msra.mxu0 0.0
    %316 = vmatprep.mubr.f32.mxu0 0.0
    %317 = vmatmul.mubr.f32.gmra.mrb[0].mxu0 %v250
    %v318 = vpop.f32.mrb[0].mxu0
    %v319 = vadd.f32 %v247, %v318
    %v320 = vpop.f32.mrb[0].mxu0
    %321 = vdwg.mxu0
    %322 = vst.msk [vmem:[#allocation5] sm:$0xff] %vm248, %v319
    // Predicated region
    $region22: #{time_embedding.1} parent=1 // pred_check
      _
    $region23: #{time_embedding.1} parent=1 // pred_check_branch
      %324 = sbr.rel (0) target = $region25
    $region24: #{time_embedding.1} parent=1 // pred_region
      %s326 = ssub.s32 128, 128
      %327 = vsyncadd [#allocation4], %s326
      %s329 = sshll.u32 [#allocation5], 4
      %s330 = int_to_ptr.vmem [resolvable:$true] %s329
      %332 = dma.vmem_to_hbm [thread:$0]  %s330, 128, %s4, [#allocation4]
    $region25: #{time_embedding.1} parent=1 // pred_fallthru
      _
    // Predicated region
    $region26: #{time_embedding.1} parent=1 // pred_check
      _
    $region27: #{time_embedding.1} parent=1 // pred_check_branch
      %334 = sbr.rel (0) target = $region29
    $region28: #{time_embedding.1} parent=1 // pred_region
      %335 = dma.done [#allocation4], 128
    $region29: #{time_embedding.1} parent=1 // pred_fallthru
      _
    %336 = vsyncpa [#allocation3], 1
    %337 = vsyncpa [#allocation4], 1

</llo_original>
